<compile_context>
chip_gen: v5e
topology: v5e:2x2
jax: 0.10.0
libtpu: 0.0.40
codegen_flags: <defaults>
</compile_context>

<pallas_src>
import functools
import math

import jax
import jax.numpy as jnp
from jax import lax
from jax.experimental import pallas as pl
from jax.experimental.pallas import tpu as pltpu


NEG_INF = -1e30  # large finite negative: avoids inf/NaN corners in masking.


def _pick_tile(dim, candidates):
    """Largest candidate tile that divides `dim`; fall back to the full extent
    (always a legal block shape), so odd sizes never silently mis-tile."""
    for c in candidates:
        if dim % c == 0:
            return c
    return dim


@functools.lru_cache(maxsize=None)
def _vmem_limit_bytes():
    """~75% of physical VMEM (v7x: ~48 MiB, v5e/v6e: ~96 MiB); 48 MiB fallback."""
    try:
        cap = int(pltpu.get_tpu_info().vmem_capacity_bytes)
        return max(32 * 1024 * 1024, min((cap * 3) // 4, 96 * 1024 * 1024))
    except Exception:
        return 48 * 1024 * 1024  # safe on every generation


# ----------------------------- Linear: y = x @ W + b -----------------------------

def _linear_kernel_single(x_ref, w_ref, b_ref, o_ref):
    # Whole K in one tile: no accumulator scratch; bias add + cast fused.
    x = x_ref[...].astype(w_ref.dtype)          # in-kernel operand cast
    acc = jnp.dot(x, w_ref[...], preferred_element_type=jnp.float32)
    o_ref[...] = (acc + b_ref[...]).astype(o_ref.dtype)


def _linear_kernel_ktiled(x_ref, w_ref, b_ref, o_ref, acc_ref):
    # x_ref: (bm, bk), w_ref: (bk, bn), b_ref: (1, bn) f32, acc_ref: (bm, bn) f32.
    k_step = pl.program_id(2)

    @pl.when(k_step == 0)
    def _init():
        acc_ref[...] = jnp.zeros_like(acc_ref)

    x = x_ref[...].astype(w_ref.dtype)          # in-kernel operand cast
    acc_ref[...] += jnp.dot(x, w_ref[...], preferred_element_type=jnp.float32)

    @pl.when(k_step == pl.num_programs(2) - 1)
    def _finalize():
        o_ref[...] = (acc_ref[...] + b_ref[...]).astype(o_ref.dtype)


def pallas_linear(x, w, b, *, out_dtype=None,
                  block_m=None, block_n=None, block_k=None):
    """x: (M, K), w: (K, N), b: (N,) -> (M, N) = x @ w + b (f32 accumulation)."""
    M, K = x.shape
    K2, N = w.shape
    assert K2 == K and b.shape == (N,)
    out_dtype = out_dtype or x.dtype

    bm = block_m or _pick_tile(M, (1024, 512, 256, 128))
    bn = block_n or _pick_tile(N, (256, 128))
    if block_k is not None:
        bk = block_k
    elif K <= 2048:
        bk = K                                   # single-K-tile fast path
    else:
        bk = _pick_tile(K, (2048, 1024, 512, 256, 128))

    # v7x has two TensorCores: keep at least one parallel axis with extent >= 2.
    if block_m is None and M // bm == 1 and N // bn == 1 and bm % 256 == 0:
        bm //= 2
    assert M % bm == 0 and N % bn == 0 and K % bk == 0

    b2 = b.astype(jnp.float32).reshape(1, N)
    cost = pl.CostEstimate(
        flops=int(2 * M * N * K),
        transcendentals=0,
        bytes_accessed=int(M * K * x.dtype.itemsize + K * N * w.dtype.itemsize
                           + M * N * jnp.dtype(out_dtype).itemsize + N * 4),
    )
    vmem_limit = _vmem_limit_bytes()

    if bk == K:
        return pl.pallas_call(
            _linear_kernel_single,
            out_shape=jax.ShapeDtypeStruct((M, N), out_dtype),
            grid_spec=pltpu.PrefetchScalarGridSpec(
                num_scalar_prefetch=0,
                grid=(M // bm, N // bn),
                in_specs=[
                    pl.BlockSpec((bm, K), lambda i, j: (i, 0)),
                    pl.BlockSpec((K, bn), lambda i, j: (0, j)),
                    pl.BlockSpec((1, bn), lambda i, j: (0, j)),
                ],
                out_specs=pl.BlockSpec((bm, bn), lambda i, j: (i, j))),
            compiler_params=pltpu.CompilerParams(
                dimension_semantics=("parallel", "parallel"),
                vmem_limit_bytes=vmem_limit),
            cost_estimate=cost,
        )(x, w, b2)

    return pl.pallas_call(
        _linear_kernel_ktiled,
        out_shape=jax.ShapeDtypeStruct((M, N), out_dtype),
        grid_spec=pltpu.PrefetchScalarGridSpec(
            num_scalar_prefetch=0,
            grid=(M // bm, N // bn, K // bk),
            in_specs=[
                pl.BlockSpec((bm, bk), lambda i, j, k: (i, k)),
                pl.BlockSpec((bk, bn), lambda i, j, k: (k, j)),
                pl.BlockSpec((1, bn), lambda i, j, k: (0, j)),
            ],
            out_specs=pl.BlockSpec((bm, bn), lambda i, j, k: (i, j)),
            scratch_shapes=[pltpu.VMEM((bm, bn), jnp.float32)]),
        compiler_params=pltpu.CompilerParams(
            dimension_semantics=("parallel", "parallel", "arbitrary"),
            vmem_limit_bytes=vmem_limit),
        cost_estimate=cost,
    )(x, w, b2)


# ----------------------- Flash causal attention (all heads fused) -----------------------

def _flash_attn_kernel(q_ref, k_ref, v_ref, o_ref,
                       q_hs, k_hs, v_hs, m_ref, l_ref, acc_ref,
                       *, sm_scale, approx_recip):
    # q_ref: (1, bq, C)   k_ref/v_ref: (1, bk, C)   o_ref: (1, bq, C); C = H*D
    # q_hs: (H, bq, D), k_hs/v_hs: (H, bk, D) in the qkv dtype (head-major repack)
    # m_ref/l_ref: (H, bq, 1) f32, acc_ref: (H, bq, D) f32
    n_head, bq, d = q_hs.shape
    bk = k_hs.shape[1]

    qi = pl.program_id(1)
    ki = pl.program_id(2)

    first_q = qi * bq
    last_q = first_q + bq - 1
    first_k = ki * bk
    last_k = first_k + bk - 1

    @pl.when(ki == 0)
    def _init():
        m_ref[...] = jnp.full(m_ref.shape, NEG_INF, dtype=m_ref.dtype)
        l_ref[...] = jnp.zeros_like(l_ref)
        acc_ref[...] = jnp.zeros_like(acc_ref)
        # Head-major repack of Q (once per q tile); softmax scale folded in here.
        for h in range(n_head):
            q_hs[h] = q_ref[0, :, h * d:(h + 1) * d] * sm_scale

    not_skipped = first_k <= last_q      # kv tile intersects the causal region

    @pl.when(not_skipped)
    def _repack_kv():
        # Head-major repack of the current kv tile (static lane slices).
        for h in range(n_head):
            k_hs[h] = k_ref[0, :, h * d:(h + 1) * d]
            v_hs[h] = v_ref[0, :, h * d:(h + 1) * d]

    def process(apply_mask):
        if apply_mask:  # mask built once per diagonal grid step, shared by all heads
            row = first_q + lax.broadcasted_iota(jnp.int32, (bq, bk), 0)
            col = first_k + lax.broadcasted_iota(jnp.int32, (bq, bk), 1)
            causal = col <= row

        def head_body(h, carry):
            # Scores are already scaled (Q pre-multiplied by sm_scale).
            s = lax.dot_general(q_hs[h], k_hs[h], (((1,), (1,)), ((), ())),
                                preferred_element_type=jnp.float32)       # (bq, bk)
            if apply_mask:
                s = jnp.where(causal, s, NEG_INF)
            m_prev = m_ref[h]                                             # (bq, 1)
            m_new = jnp.maximum(m_prev, jnp.max(s, axis=-1, keepdims=True))
            alpha = jnp.exp(m_prev - m_new)
            p = jnp.exp(s - m_new)                                        # (bq, bk) f32
            l_ref[h] = alpha * l_ref[h] + jnp.sum(p, axis=-1, keepdims=True)
            m_ref[h] = m_new
            acc_ref[h] = alpha * acc_ref[h] + jnp.dot(
                p.astype(v_hs.dtype), v_hs[h], preferred_element_type=jnp.float32)
            return carry

        lax.fori_loop(0, n_head, head_body, 0)

    # Causal tile classification: skip / fully-below-diagonal / diagonal.
    @pl.when(last_k <= first_q)                   # entirely below diagonal: no mask
    def _full_tile():
        process(apply_mask=False)

    @pl.when(jnp.logical_and(not_skipped, last_k > first_q))   # diagonal tile
    def _diag_tile():
        process(apply_mask=True)

    @pl.when(ki == pl.num_programs(2) - 1)
    def _finalize():
        # Per-head lane-slice stores into the lane-dense (bq, C) output block
        # (no H-way concatenate).
        for h in range(n_head):
            if approx_recip:
                out_h = acc_ref[h] * pl.reciprocal(l_ref[h], approx=True)
            else:
                out_h = acc_ref[h] / l_ref[h]
            o_ref[0, :, h * d:(h + 1) * d] = out_h.astype(o_ref.dtype)


def pallas_flash_attention(qkv, n_head, *, block_q=None, block_k=None):
    """qkv: (B, T, 3C) (q|k|v concatenated on the last axis) -> (B, T, C)
    causal softmax(q k^T / sqrt(D)) v for all heads."""
    B, T, threeC = qkv.shape
    assert threeC % 3 == 0
    C = threeC // 3
    assert C % n_head == 0
    D = C // n_head

    bq = block_q or _pick_tile(T, (128, 256))     # small q tile: low vreg pressure
    bk = block_k or _pick_tile(T, (256, 128))
    assert T % bq == 0 and T % bk == 0

    grid = (B, T // bq, T // bk)                  # kv axis last ("arbitrary")

    def kv_block(i, j):
        # Last kv tile that intersects the causal region of q tile i; skipped
        # (above-diagonal) steps map to the same block -> no new DMA issued.
        return jnp.minimum(j, ((i + 1) * bq - 1) // bk)

    q_spec = pl.BlockSpec((1, bq, C), lambda b, i, j: (b, i, 0))
    k_spec = pl.BlockSpec((1, bk, C), lambda b, i, j: (b, kv_block(i, j), 1))
    v_spec = pl.BlockSpec((1, bk, C), lambda b, i, j: (b, kv_block(i, j), 2))
    o_spec = pl.BlockSpec((1, bq, C), lambda b, i, j: (b, i, 0))

    cost = pl.CostEstimate(
        flops=int(2 * 2 * B * n_head * T * T * D // 2),   # QK^T + PV, causal half
        transcendentals=int(B * n_head * T * T // 2),
        bytes_accessed=int(4 * B * T * C * qkv.dtype.itemsize),
    )

    kernel = functools.partial(
        _flash_attn_kernel,
        sm_scale=1.0 / math.sqrt(D),
        approx_recip=(qkv.dtype != jnp.float32))

    return pl.pallas_call(
        kernel,
        out_shape=jax.ShapeDtypeStruct((B, T, C), qkv.dtype),
        grid_spec=pltpu.PrefetchScalarGridSpec(
            num_scalar_prefetch=0,
            grid=grid,
            in_specs=[q_spec, k_spec, v_spec],
            out_specs=o_spec,
            scratch_shapes=[
                pltpu.VMEM((n_head, bq, D), qkv.dtype),    # Q (scaled), head-major
                pltpu.VMEM((n_head, bk, D), qkv.dtype),    # K head-major
                pltpu.VMEM((n_head, bk, D), qkv.dtype),    # V head-major
                pltpu.VMEM((n_head, bq, 1), jnp.float32),  # running max
                pltpu.VMEM((n_head, bq, 1), jnp.float32),  # running denominator
                pltpu.VMEM((n_head, bq, D), jnp.float32),  # output accumulator
            ]),
        compiler_params=pltpu.CompilerParams(
            dimension_semantics=("parallel", "parallel", "arbitrary"),
            vmem_limit_bytes=_vmem_limit_bytes()),
        cost_estimate=cost,
    )(qkv, qkv, qkv)   # same buffer, three column-block views (q / k / v)


# ----------------------------- Full module forward -----------------------------

def causal_self_attention(x, w_attn, b_attn, w_proj, b_proj, n_head, *,
                          compute_dtype=jnp.bfloat16,
                          linear_blocks=(None, None, None),
                          attn_blocks=(None, None)):
    """Mirrors CausalSelfAttention.forward.

    x: (B, T, C); w_attn: (C, 3C); b_attn: (3C,); w_proj: (C, C); b_proj: (C,).
    compute_dtype: MXU operand dtype (accumulation is always f32).
    """
    B, T, C = x.shape
    assert C % n_head == 0
    out_dtype = x.dtype
    cd = jnp.dtype(compute_dtype)
    bm, bn, bk = linear_blocks
    abq, abk = attn_blocks

    # Weights in MXU compute dtype (no-op if the caller pre-cast them once).
    w_attn = w_attn if w_attn.dtype == cd else w_attn.astype(cd)
    w_proj = w_proj if w_proj.dtype == cd else w_proj.astype(cd)

    # qkv = self.c_attn(x).  x is streamed in its native dtype and cast to the
    # MXU dtype inside the kernel -> no separate HBM cast pass for activations.
    qkv = pallas_linear(x.reshape(B * T, C), w_attn, b_attn,
                        out_dtype=cd, block_m=bm, block_n=bn, block_k=bk)
    qkv = qkv.reshape(B, T, 3 * C)   # genuinely free: splits the leading dim only

    # Fused multi-head causal flash attention straight off the lane-dense
    # (B, T, 3C) qkv activation; writes a lane-dense (B, T, C) result.
    y = pallas_flash_attention(qkv, n_head, block_q=abq, block_k=abk)

    # y = self.c_proj(y)
    y = pallas_linear(y.reshape(B * T, C), w_proj, b_proj,
                      out_dtype=out_dtype, block_m=bm, block_n=bn, block_k=bk)
    return y.reshape(B, T, C)


# ----------------------------- Plain-JAX reference -----------------------------

def reference(x, w_attn, b_attn, w_proj, b_proj, n_head):
    B, T, C = x.shape
    D = C // n_head
    qkv = x.reshape(B * T, C) @ w_attn + b_attn
    qkv = qkv.reshape(B, T, 3 * C)
    q = qkv[:, :, :C].reshape(B, T, n_head, D).transpose(0, 2, 1, 3)
    k = qkv[:, :, C:2 * C].reshape(B, T, n_head, D).transpose(0, 2, 1, 3)
    v = qkv[:, :, 2 * C:].reshape(B, T, n_head, D).transpose(0, 2, 1, 3)
    s = jnp.einsum("bhqd,bhkd->bhqk", q, k) / math.sqrt(D)
    mask = jnp.tril(jnp.ones((T, T), dtype=bool))
    s = jnp.where(mask[None, None], s, -jnp.inf)
    p = jax.nn.softmax(s, axis=-1)
    y = jnp.einsum("bhqk,bhkd->bhqd", p, v)
    y = y.transpose(0, 2, 1, 3).reshape(B * T, C)
    return (y @ w_proj + b_proj).reshape(B, T, C)


if __name__ == "__main__":
    # Small shapes consistent with the module (C % n_head == 0, head_dim = 64).
    B, T, C, n_head = 2, 512, 256, 4

    key = jax.random.PRNGKey(0)
    kx, k1, k2, k3, k4 = jax.random.split(key, 5)

    x = jax.random.normal(kx, (B, T, C), dtype=jnp.float32)
    bound = 1.0 / math.sqrt(C)   # nn.Linear-like uniform init
    w_attn = jax.random.uniform(k1, (C, 3 * C), jnp.float32, -bound, bound)
    b_attn = jax.random.uniform(k2, (3 * C,), jnp.float32, -bound, bound)
    w_proj = jax.random.uniform(k3, (C, C), jnp.float32, -bound, bound)
    b_proj = jax.random.uniform(k4, (C,), jnp.float32, -bound, bound)

    ref = reference(x, w_attn, b_attn, w_proj, b_proj, n_head)

    # 1) f32 check with small forced tiles: exercises K-tiled accumulation in the
    #    linears, kv-index clamping, and all three causal-tile branches
    #    (skip / unmasked / masked).  Tolerance allows for the TPU's default
    #    (bf16-pass) f32 matmul precision on either side.
    out_f32 = jax.block_until_ready(causal_self_attention(
        x, w_attn, b_attn, w_proj, b_proj, n_head,
        compute_dtype=jnp.float32,
        linear_blocks=(128, 128, 128), attn_blocks=(128, 128)))
    assert out_f32.shape == (B, T, C)
    err32 = float(jnp.max(jnp.abs(out_f32 - ref)))
    assert jnp.allclose(out_f32, ref, atol=2e-2, rtol=2e-2), f"f32 mismatch: {err32}"

    # 2) Production bf16-MXU path with auto tiles and pre-cast weights: looser
    #    tolerance reflects bf16 operand rounding (accumulation/softmax stay f32).
    w_attn_c = w_attn.astype(jnp.bfloat16)
    w_proj_c = w_proj.astype(jnp.bfloat16)
    out_bf16 = jax.block_until_ready(causal_self_attention(
        x, w_attn_c, b_attn, w_proj_c, b_proj, n_head,
        compute_dtype=jnp.bfloat16))
    assert out_bf16.shape == (B, T, C) and out_bf16.dtype == x.dtype
    err16 = float(jnp.max(jnp.abs(out_bf16 - ref)))
    assert jnp.allclose(out_bf16, ref, atol=1e-1, rtol=1e-1), f"bf16 mismatch: {err16}"

    print("KERNEL_OK")
</pallas_src>

<mosaic_0001>
module attributes {stable_mosaic.version = 11 : i64} {
  func.func @_linear_kernel_ktiled(%arg0: i32, %arg1: i32, %arg2: i32, %arg3: memref<128x128xf32, #tpu.memory_space<vmem>>, %arg4: memref<128x128xf32, #tpu.memory_space<vmem>>, %arg5: memref<1x128xf32, #tpu.memory_space<vmem>>, %arg6: memref<128x128xf32, #tpu.memory_space<vmem>>, %arg7: memref<128x128xf32, #tpu.memory_space<vmem>>) attributes {dimension_semantics = [#tpu.dimension_semantics<parallel>, #tpu.dimension_semantics<parallel>, #tpu.dimension_semantics<arbitrary>], iteration_bounds = array<i64: 8, 6, 2>, scalar_prefetch = 0 : i64, scratch_operands = 1 : i64, tpu.core_type = #tpu.core_type<tc>, window_params = [{transform_indices = @transform_0, window_bounds = array<i64: 128, 128>}, {transform_indices = @transform_1, window_bounds = array<i64: 128, 128>}, {transform_indices = @transform_2, window_bounds = array<i64: 1, 128>}, {transform_indices = @transform_3, window_bounds = array<i64: 128, 128>}]} {
    %c0_i32 = arith.constant 0 : i32
    %0 = arith.cmpi eq, %arg2, %c0_i32 : i32
    %1 = arith.extui %0 : i1 to i32
    %c0_i32_0 = arith.constant 0 : i32
    %2 = arith.cmpi ne, %1, %c0_i32_0 : i32
    scf.if %2 {
      %cst_9 = arith.constant 0.000000e+00 : f32
      %12 = vector.broadcast %cst_9 : f32 to vector<128x128xf32>
      %c0_10 = arith.constant 0 : index
      %c0_11 = arith.constant 0 : index
      %13 = vector.load %arg7[%c0_10, %c0_11] : memref<128x128xf32, #tpu.memory_space<vmem>>, vector<128x128xf32>
      tpu.vector_store %arg7[%c0_10, %c0_11], %12 {strides = array<i32>} : memref<128x128xf32, #tpu.memory_space<vmem>>, vector<128x128xf32>,
    } else {
    }
    %c0 = arith.constant 0 : index
    %c0_1 = arith.constant 0 : index
    %3 = vector.load %arg3[%c0, %c0_1] : memref<128x128xf32, #tpu.memory_space<vmem>>, vector<128x128xf32>
    %c0_2 = arith.constant 0 : index
    %c0_3 = arith.constant 0 : index
    %4 = vector.load %arg7[%c0_2, %c0_3] : memref<128x128xf32, #tpu.memory_space<vmem>>, vector<128x128xf32>
    %c0_4 = arith.constant 0 : index
    %c0_5 = arith.constant 0 : index
    %5 = vector.load %arg4[%c0_4, %c0_5] : memref<128x128xf32, #tpu.memory_space<vmem>>, vector<128x128xf32>
    %cst = arith.constant dense<0.000000e+00> : vector<128x128xf32>
    %6 = tpu.matmul %3, %5, %cst {dimension_numbers = #tpu.dot_dimension_numbers<[1], [0], [0], [1], [0, 0, 1, 1], [], []>} : vector<128x128xf32>, vector<128x128xf32>, vector<128x128xf32> -> vector<128x128xf32>
    %7 = arith.addf %4, %6 : vector<128x128xf32>
    %c0_6 = arith.constant 0 : index
    %c0_7 = arith.constant 0 : index
    %8 = vector.load %arg7[%c0_6, %c0_7] : memref<128x128xf32, #tpu.memory_space<vmem>>, vector<128x128xf32>
    tpu.vector_store %arg7[%c0_6, %c0_7], %7 {strides = array<i32>} : memref<128x128xf32, #tpu.memory_space<vmem>>, vector<128x128xf32>,
    %c1_i32 = arith.constant 1 : i32
    %9 = arith.cmpi eq, %arg2, %c1_i32 : i32
    %10 = arith.extui %9 : i1 to i32
    %c0_i32_8 = arith.constant 0 : i32
    %11 = arith.cmpi ne, %10, %c0_i32_8 : i32
    scf.if %11 {
      %c0_9 = arith.constant 0 : index
      %c0_10 = arith.constant 0 : index
      %12 = vector.load %arg7[%c0_9, %c0_10] : memref<128x128xf32, #tpu.memory_space<vmem>>, vector<128x128xf32>
      %c0_11 = arith.constant 0 : index
      %c0_12 = arith.constant 0 : index
      %13 = vector.load %arg5[%c0_11, %c0_12] : memref<1x128xf32, #tpu.memory_space<vmem>>, vector<1x128xf32>
      %14 = vector.broadcast %13 : vector<1x128xf32> to vector<128x128xf32>
      %15 = arith.addf %12, %14 : vector<128x128xf32>
      %c0_13 = arith.constant 0 : index
      %c0_14 = arith.constant 0 : index
      %16 = vector.load %arg6[%c0_13, %c0_14] : memref<128x128xf32, #tpu.memory_space<vmem>>, vector<128x128xf32>
      tpu.vector_store %arg6[%c0_13, %c0_14], %15 {strides = array<i32>} : memref<128x128xf32, #tpu.memory_space<vmem>>, vector<128x128xf32>,
    } else {
    }
    return
  }
  func.func @transform_0(%arg0: i32, %arg1: i32, %arg2: i32) -> (i32, i32) {
    %c0_i32 = arith.constant 0 : i32
    return %arg0, %arg2 : i32, i32
  }
  func.func @transform_1(%arg0: i32, %arg1: i32, %arg2: i32) -> (i32, i32) {
    %c0_i32 = arith.constant 0 : i32
    return %arg2, %arg1 : i32, i32
  }
  func.func @transform_2(%arg0: i32, %arg1: i32, %arg2: i32) -> (i32, i32) {
    %c0_i32 = arith.constant 0 : i32
    %c0_i32_0 = arith.constant 0 : i32
    return %c0_i32, %arg1 : i32, i32
  }
  func.func @transform_3(%arg0: i32, %arg1: i32, %arg2: i32) -> (i32, i32) {
    %c0_i32 = arith.constant 0 : i32
    return %arg0, %arg1 : i32, i32
  }
}

</mosaic_0001>

<llo_original>
// kernel: tpu_custom_call.1
$region0: #{tpu_custom_call.1}
  #allocation0 [shape = 'u32[]', space=smem, size = 0x4, offset = 0x4, fixed_abs, tag = 'smem constant byte address 0x4 - core index']
  #allocation1 [shape = 'u32[72,128]{1,0:T(1,128)}', space=vmem, size = 0x9000, scoped, tag = 'internal scratch']
  #allocation2 [shape = 'f32[128,128]{1,0:T(8,128)}', space=vmem, size = 0x10000, scoped, tag = 'scratch operand']
  %s0 = inlined_call_operand.hbm [shape: f32[1024,256], index: 0, kind: input, shape index: {}]
  %s1 = inlined_call_operand.hbm [shape: f32[256,768], index: 1, kind: input, shape index: {}]
  %s2 = inlined_call_operand.hbm [shape: f32[1,768], index: 2, kind: input, shape index: {}]
  %s3 = inlined_call_operand.hbm [shape: f32[1024,768], index: 3, kind: output, shape index: {}]
  %s4 = sld [smem:[#allocation0]]
  $region65: #{tpu_custom_call.1} parent=0
    _
  %s6 = ssub.s32 1, %s4
  %s7 = scalar_select 0, %s6, %s4
  $region1: #{tpu_custom_call.1} parent=0
    #allocation3 [shape = 'u8[131072]{0}', space=vmem, size = 0x20000, scoped, tag = 'input window, operand 0']
    #allocation4 [shape = 's32[2]{0}', space=sflag, size = 0x8, scoped, tag = 'scoped memory for tpu_custom_call.1']
    #allocation5 [shape = 's32[2]{0}', space=sflag, size = 0x8, scoped, tag = 'scoped memory for tpu_custom_call.1']
    #allocation6 [shape = 'u8[131072]{0}', space=vmem, size = 0x20000, scoped, tag = 'input window, operand 1']
    #allocation7 [shape = 's32[2]{0}', space=sflag, size = 0x8, scoped, tag = 'scoped memory for tpu_custom_call.1']
    #allocation8 [shape = 'u8[1024]{0}', space=vmem, size = 0x400, scoped, tag = 'input window, operand 2']
    #allocation9 [shape = 'u8[131072]{0}', space=vmem, size = 0x20000, scoped, tag = 'output window, operand 0']
    %8 = vsyncpa [#allocation4], 0
    %s9 = scalar_lea.sflag [#allocation4], 1
    %10 = vsyncpa %s9, 0
    %11 = vsyncpa [#allocation7], 0
    %s12 = scalar_lea.sflag [#allocation7], 1
    %13 = vsyncpa %s12, 0
    %14 = vsyncpa [#allocation5], 0
    %s15 = scalar_lea.sflag [#allocation5], 1
    %16 = vsyncpa %s15, 0
    loop: start=0, step=1, limit=98
    $region2: #{tpu_custom_call.1} parent=1 // loop_pre_header
      _
    $region3: #{tpu_custom_call.1} parent=1 // loop_header
      %s18 = sphi 0, %s22
      %p19 = scmp.ge.s32.totalorder %s18, 98
      %s25 = sphi 0, %s44
      %s26 = sphi 0, %s40
      %s27 = sphi 0, %s36
      %s28 = sphi 0, %s25
      %s29 = sphi 0, %s26
      %s30 = sphi 0, %s27
      %s31 = sphi 0, %s28
      %s32 = sphi 0, %s29
      %s33 = sphi 0, %s30
      %s49 = sphi 0, %s51
      %s52 = sphi 0, %s49
      %s53 = sphi 0, %s52
      %s69 = sphi 0, %s53
      %s77 = sphi 0, %s79
      %s80 = sphi 0, %s77
      %s81 = sphi 0, %s80
      %s97 = sphi 0, %s81
      %s103 = sphi 0, %s105
      %s106 = sphi 0, %s103
      %s107 = sphi 0, %s106
      %s123 = sphi 0, %s107
      %s131 = sphi 0, %s133
      %s134 = sphi 0, %s131
      %s135 = sphi 0, %s134
      %s151 = sphi 0, %s135
    $region4: #{tpu_custom_call.1} parent=1 // loop_header_branch
      %21 = sbr.rel (%p19) target = $region8
    $region5: #{tpu_custom_call.1} parent=1 // loop_body
      %s23 = ssub.s32 %s18, 1
      %s24 = ssub.s32 %s18, 2
      %s34 = sadd.s32 1, %s27
      %p35 = scmp.ge.s32.totalorder %s34, 2
      %s36 = scalar_select %p35, 0, %s34
      %s37 = sadd.s32 1, %s26
      %s38 = scalar_select %p35, %s37, %s26
      %p39 = scmp.ge.s32.totalorder %s38, 6
      %s40 = scalar_select %p39, 0, %s38
      %s41 = sadd.s32 1, %s25
      %s42 = scalar_select %p39, %s41, %s25
      %p43 = scmp.ge.s32.totalorder %s42, 8
      %s44 = scalar_select %p43, 0, %s42
      %s45 = ssub.s32 %s25, %s44
      %s46 = ssub.s32 %s27, %s36
      %s47 = sor.u32 %s45, %s46
      %p48 = scmp.eq.s32.totalorder %s47, 0
      %s50 = sadd.s32 %s49, 1
      %s51 = scalar_select %p48, %s49, %s50
      %p54 = pneg %p48
      %p55 = scmp.eq.s32.totalorder %s18, 95
      %p56 = por %p54, %p55
      %p57 = scmp.ne.s32.totalorder %s49, %s52
      %p58 = scmp.eq.s32.totalorder %s18, 0
      %p59 = por %p57, %p58
      %p60 = scmp.ne.s32.totalorder %s49, %s52
      %p61 = scmp.eq.s32.totalorder %s23, 95
      %p62 = por %p60, %p61
      %p63 = scmp.ne.s32.totalorder %s52, %s53
      %p64 = scmp.eq.s32.totalorder %s23, 0
      %p65 = por %p63, %p64
      %p66 = scmp.ne.s32.totalorder %s52, %s53
      %p67 = scmp.eq.s32.totalorder %s24, 95
      %p68 = por %p66, %p67
      %p70 = scmp.ne.s32.totalorder %s53, %s69
      %p71 = scmp.eq.s32.totalorder %s24, 0
      %p72 = por %p70, %p71
      %s73 = ssub.s32 %s27, %s36
      %s74 = ssub.s32 %s26, %s40
      %s75 = sor.u32 %s73, %s74
      %p76 = scmp.eq.s32.totalorder %s75, 0
      %s78 = sadd.s32 %s77, 1
      %s79 = scalar_select %p76, %s77, %s78
      %p82 = pneg %p76
      %p83 = scmp.eq.s32.totalorder %s18, 95
      %p84 = por %p82, %p83
      %p85 = scmp.ne.s32.totalorder %s77, %s80
      %p86 = scmp.eq.s32.totalorder %s18, 0
      %p87 = por %p85, %p86
      %p88 = scmp.ne.s32.totalorder %s77, %s80
      %p89 = scmp.eq.s32.totalorder %s23, 95
      %p90 = por %p88, %p89
      %p91 = scmp.ne.s32.totalorder %s80, %s81
      %p92 = scmp.eq.s32.totalorder %s23, 0
      %p93 = por %p91, %p92
      %p94 = scmp.ne.s32.totalorder %s80, %s81
      %p95 = scmp.eq.s32.totalorder %s24, 95
      %p96 = por %p94, %p95
      %p98 = scmp.ne.s32.totalorder %s81, %s97
      %p99 = scmp.eq.s32.totalorder %s24, 0
      %p100 = por %p98, %p99
      %s101 = ssub.s32 %s26, %s40
      %p102 = scmp.eq.s32.totalorder %s101, 0
      %s104 = sadd.s32 %s103, 1
      %s105 = scalar_select %p102, %s103, %s104
      %p108 = pneg %p102
      %p109 = scmp.eq.s32.totalorder %s18, 95
      %p110 = por %p108, %p109
      %p111 = scmp.ne.s32.totalorder %s103, %s106
      %p112 = scmp.eq.s32.totalorder %s18, 0
      %p113 = por %p111, %p112
      %p114 = scmp.ne.s32.totalorder %s103, %s106
      %p115 = scmp.eq.s32.totalorder %s23, 95
      %p116 = por %p114, %p115
      %p117 = scmp.ne.s32.totalorder %s106, %s107
      %p118 = scmp.eq.s32.totalorder %s23, 0
      %p119 = por %p117, %p118
      %p120 = scmp.ne.s32.totalorder %s106, %s107
      %p121 = scmp.eq.s32.totalorder %s24, 95
      %p122 = por %p120, %p121
      %p124 = scmp.ne.s32.totalorder %s107, %s123
      %p125 = scmp.eq.s32.totalorder %s24, 0
      %p126 = por %p124, %p125
      %s127 = ssub.s32 %s25, %s44
      %s128 = ssub.s32 %s26, %s40
      %s129 = sor.u32 %s127, %s128
      %p130 = scmp.eq.s32.totalorder %s129, 0
      %s132 = sadd.s32 %s131, 1
      %s133 = scalar_select %p130, %s131, %s132
      %p136 = pneg %p130
      %p137 = scmp.eq.s32.totalorder %s18, 95
      %p138 = por %p136, %p137
      %p139 = scmp.ne.s32.totalorder %s131, %s134
      %p140 = scmp.eq.s32.totalorder %s18, 0
      %p141 = por %p139, %p140
      %p142 = scmp.ne.s32.totalorder %s131, %s134
      %p143 = scmp.eq.s32.totalorder %s23, 95
      %p144 = por %p142, %p143
      %p145 = scmp.ne.s32.totalorder %s134, %s135
      %p146 = scmp.eq.s32.totalorder %s23, 0
      %p147 = por %p145, %p146
      %p148 = scmp.ne.s32.totalorder %s134, %s135
      %p149 = scmp.eq.s32.totalorder %s24, 95
      %p150 = por %p148, %p149
      %p152 = scmp.ne.s32.totalorder %s135, %s151
      %p153 = scmp.eq.s32.totalorder %s24, 0
      %p154 = por %p152, %p153
      %p155 = scmp.le.s32.totalorder 1, %s18
      %p156 = scmp.lt.s32.totalorder %s18, 97
      %p157 = pnand %p155, %p156
      %p158 = pneg %p157
      // Predicated region
      $region9: #{tpu_custom_call.1} parent=5 // pred_check
        _
      $region10: #{tpu_custom_call.1} parent=5 // pred_check_branch
        %160 = sbr.rel (%p157) target = $region12
      $region11: #{tpu_custom_call.1} parent=5 // pred_region
        %s161 = ssub.s32 %s18, 1
      $region12: #{tpu_custom_call.1} parent=5 // pred_fallthru
        _
      %p162 = scmp.lt.s32.totalorder %s18, 96
      // Predicated region
      $region13: #{tpu_custom_call.1} parent=5 // pred_check
        %p163 = pneg %p162
      $region14: #{tpu_custom_call.1} parent=5 // pred_check_branch
        %165 = sbr.rel (%p163) target = $region16
      $region15: #{tpu_custom_call.1} parent=5 // pred_region
        // Predicated region
        $region17: #{tpu_custom_call.1} parent=15 // pred_check
          %p166 = pneg %p59
        $region18: #{tpu_custom_call.1} parent=15 // pred_check_branch
          %168 = sbr.rel (%p166) target = $region20
        $region19: #{tpu_custom_call.1} parent=15 // pred_region
          %s169 = sand.u32 %s49, 1
          %s170 = scalar_lea.sflag [#allocation4], %s169
          %s171 = sand.u32 %s49, 1
          %s172 = smul.addr %s171, 128
          %s173 = scalar_lea.vmem [#allocation3], %s172
          %s174 = smul.u32 16, %s25
          %176 = vsyncadd %s170, 0
          %s177 = smul.addr %s174, 2
          %s178 = sadd.s32 %s27, %s177
          %s179 = smul.addr %s178, 8
          %s180 = scalar_lea.hbm %s0, %s179
          %s181 = sshll.u32 %s180, 4
          %s182 = int_to_ptr.hbm [resolvable:$true] %s181
          %s183 = sshll.u32 %s173, 4
          %s184 = int_to_ptr.vmem [resolvable:$true] %s183
          %189 = dma.hbm_to_vmem [thread:$0]  %s182, 2048, %s184, %s170, 256, 128, 8
        $region20: #{tpu_custom_call.1} parent=15 // pred_fallthru
          _
        // Predicated region
        $region21: #{tpu_custom_call.1} parent=15 // pred_check
          %p190 = pneg %p87
        $region22: #{tpu_custom_call.1} parent=15 // pred_check_branch
          %192 = sbr.rel (%p190) target = $region24
        $region23: #{tpu_custom_call.1} parent=15 // pred_region
          %s193 = sand.u32 %s18, 1
          %s194 = scalar_lea.sflag [#allocation7], %s193
          %s195 = sand.u32 %s77, 1
          %s196 = smul.addr %s195, 128
          %s197 = scalar_lea.vmem [#allocation6], %s196
          %s198 = smul.u32 16, %s27
          %200 = vsyncadd %s194, 0
          %s201 = smul.addr %s198, 6
          %s202 = sadd.s32 %s26, %s201
          %s203 = smul.addr %s202, 8
          %s204 = scalar_lea.hbm %s1, %s203
          %s205 = sshll.u32 %s204, 4
          %s206 = int_to_ptr.hbm [resolvable:$true] %s205
          %s207 = sshll.u32 %s197, 4
          %s208 = int_to_ptr.vmem [resolvable:$true] %s207
          %213 = dma.hbm_to_vmem [thread:$0]  %s206, 2048, %s208, %s194, 768, 128, 8
        $region24: #{tpu_custom_call.1} parent=15 // pred_fallthru
          _
        // Predicated region
        $region25: #{tpu_custom_call.1} parent=15 // pred_check
          %p214 = pneg %p113
        $region26: #{tpu_custom_call.1} parent=15 // pred_check_branch
          %216 = sbr.rel (%p214) target = $region28
        $region27: #{tpu_custom_call.1} parent=15 // pred_region
          %s217 = sand.u32 %s18, 1
          %s218 = scalar_lea.sflag [#allocation7], %s217
          %s219 = sand.u32 %s103, 1
          %s220 = scalar_lea.vmem [#allocation8], %s219
          %222 = vsyncadd %s218, 0
          %s223 = scalar_lea.hbm %s2, %s26
          %s225 = sshll.u32 %s223, 4
          %s226 = int_to_ptr.hbm [resolvable:$true] %s225
          %s227 = sshll.u32 %s220, 4
          %s228 = int_to_ptr.vmem [resolvable:$true] %s227
          %230 = dma.hbm_to_vmem [thread:$0]  %s226, 16, %s228, %s218
        $region28: #{tpu_custom_call.1} parent=15 // pred_fallthru
          _
      $region16: #{tpu_custom_call.1} parent=5 // pred_fallthru
        _
      %p231 = scmp.le.s32.totalorder 1, %s18
      %p232 = scmp.lt.s32.totalorder %s18, 97
      %p233 = pnand %p231, %p232
      %p234 = pneg %p233
      // Predicated region
      $region29: #{tpu_custom_call.1} parent=5 // pred_check
        _
      $region30: #{tpu_custom_call.1} parent=5 // pred_check_branch
        %236 = sbr.rel (%p233) target = $region32
      $region31: #{tpu_custom_call.1} parent=5 // pred_region
        %s237 = ssub.s32 %s18, 1
        %s238 = sand.u32 %s52, 1
        %s239 = scalar_lea.sflag [#allocation4], %s238
        %s240 = sand.u32 %s52, 1
        %s241 = smul.addr %s240, 128
        %s242 = scalar_lea.vmem [#allocation3], %s241
        // Predicated region
        $region33: #{tpu_custom_call.1} parent=31 // pred_check
          %p243 = pneg %p65
        $region34: #{tpu_custom_call.1} parent=31 // pred_check_branch
          %245 = sbr.rel (%p243) target = $region36
        $region35: #{tpu_custom_call.1} parent=31 // pred_region
          %247 = dma.done %s239, 2048
        $region36: #{tpu_custom_call.1} parent=31 // pred_fallthru
          _
        %s248 = sand.u32 %s23, 1
        %s249 = scalar_lea.sflag [#allocation7], %s248
        %s250 = sand.u32 %s80, 1
        %s251 = smul.addr %s250, 128
        %s252 = scalar_lea.vmem [#allocation6], %s251
        // Predicated region
        $region37: #{tpu_custom_call.1} parent=31 // pred_check
          %p253 = pneg %p93
        $region38: #{tpu_custom_call.1} parent=31 // pred_check_branch
          %255 = sbr.rel (%p253) target = $region40
        $region39: #{tpu_custom_call.1} parent=31 // pred_region
          %257 = dma.done %s249, 2048
        $region40: #{tpu_custom_call.1} parent=31 // pred_fallthru
          _
        %s258 = sand.u32 %s23, 1
        %s259 = scalar_lea.sflag [#allocation7], %s258
        %s260 = sand.u32 %s106, 1
        %s261 = scalar_lea.vmem [#allocation8], %s260
        // Predicated region
        $region41: #{tpu_custom_call.1} parent=31 // pred_check
          %p262 = pneg %p119
        $region42: #{tpu_custom_call.1} parent=31 // pred_check_branch
          %264 = sbr.rel (%p262) target = $region44
        $region43: #{tpu_custom_call.1} parent=31 // pred_region
          %266 = dma.done %s259, 16
        $region44: #{tpu_custom_call.1} parent=31 // pred_fallthru
          _
        %s267 = sand.u32 %s52, 1
        %s268 = scalar_lea.sflag [#allocation4], %s267
        %s269 = sand.u32 %s52, 1
        %s270 = smul.addr %s269, 128
        %s271 = scalar_lea.vmem [#allocation3], %s270
        %p272 = pneg %p65
        %p273 = pneg %p62
        %s274 = sand.u32 %s23, 1
        %s275 = scalar_lea.sflag [#allocation7], %s274
        %s276 = sand.u32 %s80, 1
        %s277 = smul.addr %s276, 128
        %s278 = scalar_lea.vmem [#allocation6], %s277
        %p279 = pneg %p93
        %p280 = pneg %p90
        %s281 = sand.u32 %s23, 1
        %s282 = scalar_lea.sflag [#allocation7], %s281
        %s283 = sand.u32 %s106, 1
        %s284 = scalar_lea.vmem [#allocation8], %s283
        %p285 = pneg %p119
        %p286 = pneg %p116
        %p287 = pneg %p147
        %p288 = pneg %p144
        %s289 = sand.u32 %s134, 1
        %s290 = scalar_lea.sflag [#allocation5], %s289
        %s291 = sand.u32 %s134, 1
        %s292 = smul.addr %s291, 128
        %s293 = scalar_lea.vmem [#allocation9], %s292
        %s294 = smul.u32 16, %s28
        %s295 = smul.u32 16, %s30
        %s296 = smul.u32 16, %s28
        %p297 = scmp.eq.s32.totalorder %s30, 0
        // Predicated region
        $region45: #{tpu_custom_call.1} parent=31 // pred_check
          %p298 = pneg %p297
        $region46: #{tpu_custom_call.1} parent=31 // pred_check_branch
          %300 = sbr.rel (%p298) target = $region48
        $region47: #{tpu_custom_call.1} parent=31 // pred_region
          %301 = vst [vmem:[#allocation2] sm:$0xff] 0.0
          %302 = vst [vmem:[#allocation2 + $0x8] sm:$0xff] 0.0
          %303 = vst [vmem:[#allocation2 + $0x10] sm:$0xff] 0.0
          %304 = vst [vmem:[#allocation2 + $0x18] sm:$0xff] 0.0
          %305 = vst [vmem:[#allocation2 + $0x20] sm:$0xff] 0.0
          %306 = vst [vmem:[#allocation2 + $0x28] sm:$0xff] 0.0
          %307 = vst [vmem:[#allocation2 + $0x30] sm:$0xff] 0.0
          %308 = vst [vmem:[#allocation2 + $0x38] sm:$0xff] 0.0
          %309 = vst [vmem:[#allocation2 + $0x40] sm:$0xff] 0.0
          %310 = vst [vmem:[#allocation2 + $0x48] sm:$0xff] 0.0
          %311 = vst [vmem:[#allocation2 + $0x50] sm:$0xff] 0.0
          %312 = vst [vmem:[#allocation2 + $0x58] sm:$0xff] 0.0
          %313 = vst [vmem:[#allocation2 + $0x60] sm:$0xff] 0.0
          %314 = vst [vmem:[#allocation2 + $0x68] sm:$0xff] 0.0
          %315 = vst [vmem:[#allocation2 + $0x70] sm:$0xff] 0.0
          %316 = vst [vmem:[#allocation2 + $0x78] sm:$0xff] 0.0
        $region48: #{tpu_custom_call.1} parent=31 // pred_fallthru
          _
        %v317 = vld [vmem:[%s242] sm:$0xff]
        %v318 = vld [vmem:[%s242 + $0x8] sm:$0xff]
        %v319 = vld [vmem:[%s242 + $0x10] sm:$0xff]
        %v320 = vld [vmem:[%s242 + $0x18] sm:$0xff]
        %v321 = vld [vmem:[%s242 + $0x20] sm:$0xff]
        %v322 = vld [vmem:[%s242 + $0x28] sm:$0xff]
        %v323 = vld [vmem:[%s242 + $0x30] sm:$0xff]
        %v324 = vld [vmem:[%s242 + $0x38] sm:$0xff]
        %v325 = vld [vmem:[%s242 + $0x40] sm:$0xff]
        %v326 = vld [vmem:[%s242 + $0x48] sm:$0xff]
        %v327 = vld [vmem:[%s242 + $0x50] sm:$0xff]
        %v328 = vld [vmem:[%s242 + $0x58] sm:$0xff]
        %v329 = vld [vmem:[%s242 + $0x60] sm:$0xff]
        %v330 = vld [vmem:[%s242 + $0x68] sm:$0xff]
        %v331 = vld [vmem:[%s242 + $0x70] sm:$0xff]
        %v332 = vld [vmem:[%s242 + $0x78] sm:$0xff]
        %v333 = vld [vmem:[#allocation2] sm:$0xff]
        %v334 = vld [vmem:[#allocation2 + $0x8] sm:$0xff]
        %v335 = vld [vmem:[#allocation2 + $0x10] sm:$0xff]
        %v336 = vld [vmem:[#allocation2 + $0x18] sm:$0xff]
        %v337 = vld [vmem:[#allocation2 + $0x20] sm:$0xff]
        %v338 = vld [vmem:[#allocation2 + $0x28] sm:$0xff]
        %v339 = vld [vmem:[#allocation2 + $0x30] sm:$0xff]
        %v340 = vld [vmem:[#allocation2 + $0x38] sm:$0xff]
        %v341 = vld [vmem:[#allocation2 + $0x40] sm:$0xff]
        %v342 = vld [vmem:[#allocation2 + $0x48] sm:$0xff]
        %v343 = vld [vmem:[#allocation2 + $0x50] sm:$0xff]
        %v344 = vld [vmem:[#allocation2 + $0x58] sm:$0xff]
        %v345 = vld [vmem:[#allocation2 + $0x60] sm:$0xff]
        %v346 = vld [vmem:[#allocation2 + $0x68] sm:$0xff]
        %v347 = vld [vmem:[#allocation2 + $0x70] sm:$0xff]
        %v348 = vld [vmem:[#allocation2 + $0x78] sm:$0xff]
        %v349 = vld [vmem:[%s252] sm:$0xff]
        %v350 = vld [vmem:[%s252 + $0x8] sm:$0xff]
        %v351 = vld [vmem:[%s252 + $0x10] sm:$0xff]
        %v352 = vld [vmem:[%s252 + $0x18] sm:$0xff]
        %v353 = vld [vmem:[%s252 + $0x20] sm:$0xff]
        %v354 = vld [vmem:[%s252 + $0x28] sm:$0xff]
        %v355 = vld [vmem:[%s252 + $0x30] sm:$0xff]
        %v356 = vld [vmem:[%s252 + $0x38] sm:$0xff]
        %v357 = vld [vmem:[%s252 + $0x40] sm:$0xff]
        %v358 = vld [vmem:[%s252 + $0x48] sm:$0xff]
        %v359 = vld [vmem:[%s252 + $0x50] sm:$0xff]
        %v360 = vld [vmem:[%s252 + $0x58] sm:$0xff]
        %v361 = vld [vmem:[%s252 + $0x60] sm:$0xff]
        %v362 = vld [vmem:[%s252 + $0x68] sm:$0xff]
        %v363 = vld [vmem:[%s252 + $0x70] sm:$0xff]
        %v364 = vld [vmem:[%s252 + $0x78] sm:$0xff]
        %365 = vmatpush.msra.mxu0 %v364
        %366 = vmatpush.msra.mxu0 %v363
        %367 = vmatpush.msra.mxu0 %v362
        %368 = vmatpush.msra.mxu0 %v361
        %369 = vmatpush.msra.mxu0 %v360
        %370 = vmatpush.msra.mxu0 %v359
        %371 = vmatpush.msra.mxu0 %v358
        %372 = vmatpush.msra.mxu0 %v357
        %373 = vmatpush.msra.mxu0 %v356
        %374 = vmatpush.msra.mxu0 %v355
        %375 = vmatpush.msra.mxu0 %v354
        %376 = vmatpush.msra.mxu0 %v353
        %377 = vmatpush.msra.mxu0 %v352
        %378 = vmatpush.msra.mxu0 %v351
        %379 = vmatpush.msra.mxu0 %v350
        %380 = vmatpush.msra.mxu0 %v349
        %381 = vmatmul.f32.gmra.mxu0 %v317
        %v382 = vpop.f32.mrf.mxu0
        %v383 = vadd.f32 0.0, %v382
        %384 = vmatmul.f32.gmra.mxu0 %v318
        %v385 = vpop.f32.mrf.mxu0
        %v386 = vadd.f32 0.0, %v385
        %387 = vmatmul.f32.gmra.mxu0 %v319
        %v388 = vpop.f32.mrf.mxu0
        %v389 = vadd.f32 0.0, %v388
        %390 = vmatmul.f32.gmra.mxu0 %v320
        %v391 = vpop.f32.mrf.mxu0
        %v392 = vadd.f32 0.0, %v391
        %393 = vmatmul.f32.gmra.mxu0 %v321
        %v394 = vpop.f32.mrf.mxu0
        %v395 = vadd.f32 0.0, %v394
        %396 = vmatmul.f32.gmra.mxu0 %v322
        %v397 = vpop.f32.mrf.mxu0
        %v398 = vadd.f32 0.0, %v397
        %399 = vmatmul.f32.gmra.mxu0 %v323
        %v400 = vpop.f32.mrf.mxu0
        %v401 = vadd.f32 0.0, %v400
        %402 = vmatmul.f32.gmra.mxu0 %v324
        %v403 = vpop.f32.mrf.mxu0
        %v404 = vadd.f32 0.0, %v403
        %405 = vmatmul.f32.gmra.mxu0 %v325
        %v406 = vpop.f32.mrf.mxu0
        %v407 = vadd.f32 0.0, %v406
        %408 = vmatmul.f32.gmra.mxu0 %v326
        %v409 = vpop.f32.mrf.mxu0
        %v410 = vadd.f32 0.0, %v409
        %411 = vmatmul.f32.gmra.mxu0 %v327
        %v412 = vpop.f32.mrf.mxu0
        %v413 = vadd.f32 0.0, %v412
        %414 = vmatmul.f32.gmra.mxu0 %v328
        %v415 = vpop.f32.mrf.mxu0
        %v416 = vadd.f32 0.0, %v415
        %417 = vmatmul.f32.gmra.mxu0 %v329
        %v418 = vpop.f32.mrf.mxu0
        %v419 = vadd.f32 0.0, %v418
        %420 = vmatmul.f32.gmra.mxu0 %v330
        %v421 = vpop.f32.mrf.mxu0
        %v422 = vadd.f32 0.0, %v421
        %423 = vmatmul.f32.gmra.mxu0 %v331
        %v424 = vpop.f32.mrf.mxu0
        %v425 = vadd.f32 0.0, %v424
        %426 = vmatmul.f32.gmra.mxu0 %v332
        %v427 = vpop.f32.mrf.mxu0
        %v428 = vadd.f32 0.0, %v427
        %429 = vdwg.mxu0
        %v430 = vadd.f32 %v333, %v383
        %v431 = vadd.f32 %v334, %v386
        %v432 = vadd.f32 %v335, %v389
        %v433 = vadd.f32 %v336, %v392
        %v434 = vadd.f32 %v337, %v395
        %v435 = vadd.f32 %v338, %v398
        %v436 = vadd.f32 %v339, %v401
        %v437 = vadd.f32 %v340, %v404
        %v438 = vadd.f32 %v341, %v407
        %v439 = vadd.f32 %v342, %v410
        %v440 = vadd.f32 %v343, %v413
        %v441 = vadd.f32 %v344, %v416
        %v442 = vadd.f32 %v345, %v419
        %v443 = vadd.f32 %v346, %v422
        %v444 = vadd.f32 %v347, %v425
        %v445 = vadd.f32 %v348, %v428
        %446 = vst [vmem:[#allocation2] sm:$0xff] %v430
        %447 = vst [vmem:[#allocation2 + $0x8] sm:$0xff] %v431
        %448 = vst [vmem:[#allocation2 + $0x10] sm:$0xff] %v432
        %449 = vst [vmem:[#allocation2 + $0x18] sm:$0xff] %v433
        %450 = vst [vmem:[#allocation2 + $0x20] sm:$0xff] %v434
        %451 = vst [vmem:[#allocation2 + $0x28] sm:$0xff] %v435
        %452 = vst [vmem:[#allocation2 + $0x30] sm:$0xff] %v436
        %453 = vst [vmem:[#allocation2 + $0x38] sm:$0xff] %v437
        %454 = vst [vmem:[#allocation2 + $0x40] sm:$0xff] %v438
        %455 = vst [vmem:[#allocation2 + $0x48] sm:$0xff] %v439
        %456 = vst [vmem:[#allocation2 + $0x50] sm:$0xff] %v440
        %457 = vst [vmem:[#allocation2 + $0x58] sm:$0xff] %v441
        %458 = vst [vmem:[#allocation2 + $0x60] sm:$0xff] %v442
        %459 = vst [vmem:[#allocation2 + $0x68] sm:$0xff] %v443
        %460 = vst [vmem:[#allocation2 + $0x70] sm:$0xff] %v444
        %461 = vst [vmem:[#allocation2 + $0x78] sm:$0xff] %v445
        %p462 = scmp.eq.s32.totalorder %s30, 1
        // Predicated region
        $region49: #{tpu_custom_call.1} parent=31 // pred_check
          %p463 = pneg %p462
        $region50: #{tpu_custom_call.1} parent=31 // pred_check_branch
          %465 = sbr.rel (%p463) target = $region52
        $region51: #{tpu_custom_call.1} parent=31 // pred_region
          %v466 = vld [vmem:[#allocation2] sm:$0xff]
          %v467 = vld [vmem:[#allocation2 + $0x8] sm:$0xff]
          %v468 = vld [vmem:[#allocation2 + $0x10] sm:$0xff]
          %v469 = vld [vmem:[#allocation2 + $0x18] sm:$0xff]
          %v470 = vld [vmem:[#allocation2 + $0x20] sm:$0xff]
          %v471 = vld [vmem:[#allocation2 + $0x28] sm:$0xff]
          %v472 = vld [vmem:[#allocation2 + $0x30] sm:$0xff]
          %v473 = vld [vmem:[#allocation2 + $0x38] sm:$0xff]
          %v474 = vld [vmem:[#allocation2 + $0x40] sm:$0xff]
          %v475 = vld [vmem:[#allocation2 + $0x48] sm:$0xff]
          %v476 = vld [vmem:[#allocation2 + $0x50] sm:$0xff]
          %v477 = vld [vmem:[#allocation2 + $0x58] sm:$0xff]
          %v478 = vld [vmem:[#allocation2 + $0x60] sm:$0xff]
          %v479 = vld [vmem:[#allocation2 + $0x68] sm:$0xff]
          %v480 = vld [vmem:[#allocation2 + $0x70] sm:$0xff]
          %v481 = vld [vmem:[#allocation2 + $0x78] sm:$0xff]
          %v482 = vld [vmem:[%s261] sm:$0x1]
          %v484 = vperm.slane %v482, 0
          %v486 = vadd.f32 %v466, %v484
          %v487 = vadd.f32 %v467, %v484
          %v488 = vadd.f32 %v468, %v484
          %v489 = vadd.f32 %v469, %v484
          %v490 = vadd.f32 %v470, %v484
          %v491 = vadd.f32 %v471, %v484
          %v492 = vadd.f32 %v472, %v484
          %v493 = vadd.f32 %v473, %v484
          %v494 = vadd.f32 %v474, %v484
          %v495 = vadd.f32 %v475, %v484
          %v496 = vadd.f32 %v476, %v484
          %v497 = vadd.f32 %v477, %v484
          %v498 = vadd.f32 %v478, %v484
          %v499 = vadd.f32 %v479, %v484
          %v500 = vadd.f32 %v480, %v484
          %v501 = vadd.f32 %v481, %v484
          %502 = vst [vmem:[%s293] sm:$0xff] %v486
          %503 = vst [vmem:[%s293 + $0x8] sm:$0xff] %v487
          %504 = vst [vmem:[%s293 + $0x10] sm:$0xff] %v488
          %505 = vst [vmem:[%s293 + $0x18] sm:$0xff] %v489
          %506 = vst [vmem:[%s293 + $0x20] sm:$0xff] %v490
          %507 = vst [vmem:[%s293 + $0x28] sm:$0xff] %v491
          %508 = vst [vmem:[%s293 + $0x30] sm:$0xff] %v492
          %509 = vst [vmem:[%s293 + $0x38] sm:$0xff] %v493
          %510 = vst [vmem:[%s293 + $0x40] sm:$0xff] %v494
          %511 = vst [vmem:[%s293 + $0x48] sm:$0xff] %v495
          %512 = vst [vmem:[%s293 + $0x50] sm:$0xff] %v496
          %513 = vst [vmem:[%s293 + $0x58] sm:$0xff] %v497
          %514 = vst [vmem:[%s293 + $0x60] sm:$0xff] %v498
          %515 = vst [vmem:[%s293 + $0x68] sm:$0xff] %v499
          %516 = vst [vmem:[%s293 + $0x70] sm:$0xff] %v500
          %517 = vst [vmem:[%s293 + $0x78] sm:$0xff] %v501
        $region52: #{tpu_custom_call.1} parent=31 // pred_fallthru
          _
        %s518 = sand.u32 %s134, 1
        %s519 = scalar_lea.sflag [#allocation5], %s518
        %s520 = sand.u32 %s134, 1
        %s521 = smul.addr %s520, 128
        %s522 = scalar_lea.vmem [#allocation9], %s521
        // Predicated region
        $region53: #{tpu_custom_call.1} parent=31 // pred_check
          %p523 = pneg %p144
        $region54: #{tpu_custom_call.1} parent=31 // pred_check_branch
          %525 = sbr.rel (%p523) target = $region56
        $region55: #{tpu_custom_call.1} parent=31 // pred_region
          %s526 = smul.u32 16, %s28
          %528 = vsyncadd %s519, 0
          %s529 = smul.addr %s526, 6
          %s530 = sadd.s32 %s29, %s529
          %s531 = smul.addr %s530, 8
          %s532 = scalar_lea.hbm %s3, %s531
          %s533 = sshll.u32 %s522, 4
          %s534 = int_to_ptr.vmem [resolvable:$true] %s533
          %s535 = sshll.u32 %s532, 4
          %s536 = int_to_ptr.hbm [resolvable:$true] %s535
          %541 = dma.vmem_to_hbm [thread:$0]  %s534, 2048, %s536, %s519, 128, 768, 8
        $region56: #{tpu_custom_call.1} parent=31 // pred_fallthru
          _
      $region32: #{tpu_custom_call.1} parent=5 // pred_fallthru
        _
      %p542 = scmp.le.s32.totalorder 2, %s18
      // Predicated region
      $region57: #{tpu_custom_call.1} parent=5 // pred_check
        %p543 = pneg %p542
      $region58: #{tpu_custom_call.1} parent=5 // pred_check_branch
        %545 = sbr.rel (%p543) target = $region60
      $region59: #{tpu_custom_call.1} parent=5 // pred_region
        %s546 = ssub.s32 %s18, 2
        // Predicated region
        $region61: #{tpu_custom_call.1} parent=59 // pred_check
          %p547 = pneg %p150
        $region62: #{tpu_custom_call.1} parent=59 // pred_check_branch
          %549 = sbr.rel (%p547) target = $region64
        $region63: #{tpu_custom_call.1} parent=59 // pred_region
          %s550 = sand.u32 %s135, 1
          %s551 = scalar_lea.sflag [#allocation5], %s550
          %s552 = sand.u32 %s135, 1
          %s553 = smul.addr %s552, 128
          %s554 = scalar_lea.vmem [#allocation9], %s553
          %556 = dma.done %s551, 2048
        $region64: #{tpu_custom_call.1} parent=59 // pred_fallthru
          _
      $region60: #{tpu_custom_call.1} parent=5 // pred_fallthru
        _
    $region6: #{tpu_custom_call.1} parent=1 // loop_footer
      %s22 = sadd.s32 1, %s18
    $region7: #{tpu_custom_call.1} parent=1 // loop_footer_branch
      %17 = sbr.rel target = $region3
    $region8: #{tpu_custom_call.1} parent=1 // loop_exit
      _
    %557 = vsyncpa [#allocation4], 1
    %s558 = scalar_lea.sflag [#allocation4], 1
    %559 = vsyncpa %s558, 1
    %560 = vsyncpa [#allocation7], 1
    %s561 = scalar_lea.sflag [#allocation7], 1
    %562 = vsyncpa %s561, 1
    %563 = vsyncpa [#allocation5], 1
    %s564 = scalar_lea.sflag [#allocation5], 1
    %565 = vsyncpa %s564, 1

</llo_original>
